<compile_context>
chip_gen: v7x
topology: tpu7x:2x2x1
jax: 0.10.0
libtpu: 0.0.40
codegen_flags: <defaults>
</compile_context>

<pallas_src>
import functools
import math

import jax
import jax.numpy as jnp
from jax import lax
from jax.experimental import pallas as pl
from jax.experimental.pallas import tpu as pltpu

BN_EPS = 1e-5


def _round_up(x, m):
    return ((x + m - 1) // m) * m


def _pick_tile(dim, candidates):
    """Largest candidate dividing `dim`, else the full dim (always legal)."""
    for c in candidates:
        if dim % c == 0:
            return c
    return dim


def _vmem_limit_bytes():
    """~3/4 of physical VMEM (96 MiB cap on 128 MiB parts, 48 MiB on v7x)."""
    try:
        cap = int(pltpu.get_tpu_info().vmem_capacity_bytes)
    except Exception:  # pragma: no cover - conservative fallback
        cap = 64 * 1024 * 1024
    return max(32 * 1024 * 1024, min((cap * 3) // 4, 96 * 1024 * 1024))


_VMEM_LIMIT = _vmem_limit_bytes()


# ----------------------------------------------------------------------------
# Pallas kernel 1: tiled matmul, fused scale/bias (+residual) (+ReLU) epilogue
# ----------------------------------------------------------------------------
def _mm_kernel(a_ref, b_ref, sb_ref, o_ref, acc_ref, *, relu):
    k = pl.program_id(2)

    @pl.when(k == 0)
    def _():
        acc_ref[...] = jnp.zeros_like(acc_ref)

    acc_ref[...] += jnp.dot(a_ref[...], b_ref[...],
                            preferred_element_type=jnp.float32)

    @pl.when(k == pl.num_programs(2) - 1)
    def _():
        y = acc_ref[...] * sb_ref[0:1, :] + sb_ref[1:2, :]
        if relu:
            y = jnp.maximum(y, 0.0)
        o_ref[...] = y.astype(o_ref.dtype)


def _mm_res_kernel(a_ref, b_ref, sb_ref, r_ref, o_ref, acc_ref, *, relu):
    k = pl.program_id(2)

    @pl.when(k == 0)
    def _():
        acc_ref[...] = jnp.zeros_like(acc_ref)

    acc_ref[...] += jnp.dot(a_ref[...], b_ref[...],
                            preferred_element_type=jnp.float32)

    @pl.when(k == pl.num_programs(2) - 1)
    def _():
        y = acc_ref[...] * sb_ref[0:1, :] + sb_ref[1:2, :]
        y = y + r_ref[...].astype(jnp.float32)          # fused residual add
        if relu:
            y = jnp.maximum(y, 0.0)
        o_ref[...] = y.astype(o_ref.dtype)


def matmul_fused(A, B, sb, *, relu, residual=None, out_dtype=jnp.bfloat16):
    """out = act(A @ B * sb[0] + sb[1] (+ residual)).

    A: (M, K), B: (K, N)  (cast to bf16, f32 accumulation), sb: (2, N) f32.
    """
    A = A.astype(jnp.bfloat16)
    B = B.astype(jnp.bfloat16)
    sb = sb.astype(jnp.float32)
    M, K = A.shape
    _, N = B.shape
    if K < 128:
        # Only the very first conv hits this (K = 9*3 = 27): zero-pad the tiny
        # K so the contraction never touches lane padding.
        A = jnp.pad(A, ((0, 0), (0, 128 - K)))
        B = jnp.pad(B, ((0, 128 - K), (0, 0)))
        K = 128

    TN = _pick_tile(N, (512, 256, 128))
    TK = _pick_tile(K, (512, 384, 256, 128))
    TM = M if M <= 2048 else 1024          # big M tiles; small M = full block

    grid = (pl.cdiv(M, TM), N // TN, K // TK)

    in_specs = [
        pl.BlockSpec((TM, TK), lambda i, j, k: (i, k)),
        pl.BlockSpec((TK, TN), lambda i, j, k: (k, j)),
        pl.BlockSpec((2, TN), lambda i, j, k: (0, j)),
    ]
    args = [A, B, sb]
    if residual is not None:
        in_specs.append(pl.BlockSpec((TM, TN), lambda i, j, k: (i, j)))
        args.append(residual)
        kernel = functools.partial(_mm_res_kernel, relu=relu)
    else:
        kernel = functools.partial(_mm_kernel, relu=relu)

    return pl.pallas_call(
        kernel,
        out_shape=jax.ShapeDtypeStruct((M, N), out_dtype),
        grid_spec=pltpu.PrefetchScalarGridSpec(
            num_scalar_prefetch=0,
            grid=grid,
            in_specs=in_specs,
            out_specs=pl.BlockSpec((TM, TN), lambda i, j, k: (i, j)),
            scratch_shapes=[pltpu.VMEM((TM, TN), jnp.float32)],
        ),
        compiler_params=pltpu.CompilerParams(
            dimension_semantics=("parallel", "parallel", "arbitrary"),
            vmem_limit_bytes=_VMEM_LIMIT),
    )(*args)


# ----------------------------------------------------------------------------
# Pallas kernel 2: stride-1 3x3 conv, taps streamed from one resident slab
# ----------------------------------------------------------------------------
def _conv3x3_kernel(x_ref, w_ref, sb_ref, o_ref, acc_ref, *, offs, m_blk, relu):
    k = pl.program_id(2)

    @pl.when(k == 0)
    def _():
        acc_ref[...] = jnp.zeros_like(acc_ref)

    # 9 taps = 9 statically-offset slices of the same VMEM slab.
    for t, off in enumerate(offs):
        a = x_ref[off:off + m_blk, :]
        acc_ref[...] += jnp.dot(a, w_ref[t],
                                preferred_element_type=jnp.float32)

    @pl.when(k == pl.num_programs(2) - 1)
    def _():
        y = acc_ref[...] * sb_ref[0:1, :] + sb_ref[1:2, :]
        if relu:
            y = jnp.maximum(y, 0.0)
        o_ref[...] = y.astype(o_ref.dtype)


@functools.partial(jax.jit, static_argnames=("dilation", "padding", "relu",
                                             "out_dtype"))
def conv3x3_s1_fused(x, w9, sb, *, dilation, padding, relu,
                     out_dtype=jnp.bfloat16):
    """3x3, stride-1, 'same' (padding==dilation) conv + fused BN (+ReLU).

    No im2col materialization; row-block tiled so VMEM stays within budget
    for arbitrarily large feature maps.
    x: (N, H, W, Cin), w9: (9, Cin, Cout) bf16, sb: (2, Cout) f32.
    """
    assert padding == dilation, "all stride-1 3x3s in PSPNet have p == d"
    x = x.astype(jnp.bfloat16)
    N, H, W, Cin = x.shape
    Cout = w9.shape[-1]
    d = dilation
    Ho, Wo = H, W
    Wp = _round_up(W + 2 * d, 8)          # sublane-aligned padded width

    TN = _pick_tile(Cout, (256, 128))
    TK = Cin if Cin <= 512 else _pick_tile(Cin, (512, 256, 128))

    # Row-block size so (acc + double-buffered slab/weights/output) fits VMEM.
    budget = int(_VMEM_LIMIT * 0.65)

    def _estimate(rb):
        m = rb * Wp
        slab = (rb + 2 * d + 1) * Wp
        return (4 * m * TN                 # f32 accumulator
                + 2 * 2 * slab * TK        # x slab (bf16, double buffered)
                + 2 * 2 * 9 * TK * TN      # weights (bf16, double buffered)
                + 2 * 2 * m * TN)          # output block (bf16, dbl buffered)

    RB = Ho
    while RB > 8 and _estimate(RB) > budget:
        RB = (RB + 1) // 2
    n_rb = -(-Ho // RB)
    RB = -(-Ho // n_rb)                    # even-ish row blocks
    m_blk = RB * Wp
    Lslab = (RB + 2 * d + 1) * Wp          # +1 row so the last tap slice fits

    # Zero-pad: d rows top, enough rows bottom for block padding + tap slack,
    # d cols left, (Wp - W - d) cols right (lane/sublane friendly).
    pad_bottom = d + (n_rb * RB - Ho) + 1
    xp = jnp.pad(x, ((0, 0), (d, pad_bottom), (d, Wp - W - d), (0, 0)))
    if n_rb == 1:
        xrb = xp.reshape(N, Lslab, Cin)
    else:
        blocks = [xp[:, r * RB: r * RB + RB + 2 * d + 1]
                  for r in range(n_rb)]           # halo'd row blocks
        xrb = jnp.stack(blocks, axis=1).reshape(N * n_rb, Lslab, Cin)
    NB = N * n_rb

    offs = tuple(i * d * Wp + j * d for i in range(3) for j in range(3))
    grid = (NB, Cout // TN, Cin // TK)

    out = pl.pallas_call(
        functools.partial(_conv3x3_kernel, offs=offs, m_blk=m_blk, relu=relu),
        out_shape=jax.ShapeDtypeStruct((NB, m_blk, Cout), out_dtype),
        grid_spec=pltpu.PrefetchScalarGridSpec(
            num_scalar_prefetch=0,
            grid=grid,
            in_specs=[
                pl.BlockSpec((None, Lslab, TK), lambda b, j, k: (b, 0, k)),
                pl.BlockSpec((9, TK, TN), lambda b, j, k: (0, k, j)),
                pl.BlockSpec((2, TN), lambda b, j, k: (0, j)),
            ],
            out_specs=pl.BlockSpec((None, m_blk, TN),
                                   lambda b, j, k: (b, 0, j)),
            scratch_shapes=[pltpu.VMEM((m_blk, TN), jnp.float32)],
        ),
        compiler_params=pltpu.CompilerParams(
            dimension_semantics=("parallel", "parallel", "arbitrary"),
            vmem_limit_bytes=_VMEM_LIMIT),
    )(xrb, w9, sb)
    # TODO(synk): the final (Ho, Wo) crop could be fused into the kernel's
    # epilogue (per-row strided stores) to save one activation HBM round trip.
    out = out.reshape(N, n_rb * RB, Wp, Cout)
    return out[:, :Ho, :Wo, :]


# ----------------------------------------------------------------------------
# Conv wrappers
# ----------------------------------------------------------------------------
@functools.partial(jax.jit, static_argnames=("stride", "relu", "out_dtype"))
def conv1x1_fused(x, w, sb, *, stride=1, relu=True, residual=None,
                  out_dtype=jnp.bfloat16):
    """1x1 conv + BN/bias (+fused residual) (+ReLU).  w: (Cin, Cout) bf16."""
    if stride > 1:
        x = x[:, ::stride, ::stride, :]
    N, H, W, Cin = x.shape
    Cout = w.shape[1]
    A = x.reshape(N * H * W, Cin)
    res = residual.reshape(N * H * W, Cout) if residual is not None else None
    out = matmul_fused(A, w, sb, relu=relu, residual=res, out_dtype=out_dtype)
    return out.reshape(N, H, W, Cout)


@functools.partial(jax.jit, static_argnames=("stride", "padding", "dilation",
                                             "relu", "out_dtype"))
def conv3x3_im2col(x, w9, sb, *, stride, padding, dilation, relu,
                   out_dtype=jnp.bfloat16):
    """Generic 3x3 conv via im2col — only the 2 stride-2 3x3 convs use this."""
    x = x.astype(jnp.bfloat16)
    N, H, W, Cin = x.shape
    Cout = w9.shape[-1]
    s, p, d = stride, padding, dilation
    Ho = (H + 2 * p - 2 * d - 1) // s + 1
    Wo = (W + 2 * p - 2 * d - 1) // s + 1
    xp = jnp.pad(x, ((0, 0), (p, p), (p, p), (0, 0)))
    cols = []
    for i in range(3):
        for j in range(3):
            sl = lax.slice(xp, (0, i * d, j * d, 0),
                           (N, i * d + s * (Ho - 1) + 1,
                            j * d + s * (Wo - 1) + 1, Cin),
                           (1, s, s, 1))
            cols.append(sl)
    A = jnp.concatenate(cols, axis=-1).reshape(N * Ho * Wo, 9 * Cin)
    B = w9.reshape(9 * Cin, Cout)
    out = matmul_fused(A, B, sb, relu=relu, out_dtype=out_dtype)
    return out.reshape(N, Ho, Wo, Cout)


# ----------------------------------------------------------------------------
# Glue ops (pooling, bilinear interpolation) — plain JAX
# ----------------------------------------------------------------------------
def max_pool_3x3_s2_p1(x):
    return lax.reduce_window(x, jnp.array(-jnp.inf, x.dtype), lax.max,
                             (1, 3, 3, 1), (1, 2, 2, 1),
                             ((0, 0), (1, 1), (1, 1), (0, 0)))


def adaptive_avg_pool(x, bh, bw):
    """Adaptive average pooling; f32 accumulation without an f32 HBM copy."""
    N, H, W, C = x.shape
    rows = []
    for i in range(bh):
        h0, h1 = (i * H) // bh, -(-((i + 1) * H) // bh)
        cols = []
        for j in range(bw):
            w0, w1 = (j * W) // bw, -(-((j + 1) * W) // bw)
            cols.append(jnp.mean(x[:, h0:h1, w0:w1, :], axis=(1, 2),
                                 dtype=jnp.float32))
        rows.append(jnp.stack(cols, axis=1))
    return jnp.stack(rows, axis=1)                      # (N, bh, bw, C) f32


def _coords(out_size, in_size):
    if in_size == 1 or out_size == 1:
        return jnp.zeros((out_size,), jnp.float32)
    return jnp.arange(out_size, dtype=jnp.float32) * ((in_size - 1) /
                                                      (out_size - 1))


def bilinear_resize(x, out_h, out_w):
    """F.interpolate(mode='bilinear', align_corners=True) on NHWC (f32 out)."""
    x = x.astype(jnp.float32)
    N, H, W, C = x.shape
    ys, xs = _coords(out_h, H), _coords(out_w, W)
    y0 = jnp.floor(ys).astype(jnp.int32)
    x0 = jnp.floor(xs).astype(jnp.int32)
    y1 = jnp.minimum(y0 + 1, H - 1)
    x1 = jnp.minimum(x0 + 1, W - 1)
    wy = (ys - y0.astype(jnp.float32)).reshape(1, out_h, 1, 1)
    wx = (xs - x0.astype(jnp.float32)).reshape(1, 1, out_w, 1)
    v00 = x[:, y0[:, None], x0[None, :], :]
    v01 = x[:, y0[:, None], x1[None, :], :]
    v10 = x[:, y1[:, None], x0[None, :], :]
    v11 = x[:, y1[:, None], x1[None, :], :]
    top = v00 * (1.0 - wx) + v01 * wx
    bot = v10 * (1.0 - wx) + v11 * wx
    return top * (1.0 - wy) + bot * wy


# ----------------------------------------------------------------------------
# Deterministic parameter construction (synthetic, no checkpoint load)
# ----------------------------------------------------------------------------
class ParamGen:
    def __init__(self, seed=0):
        self._key = jax.random.PRNGKey(seed)
        self._n = 0

    def _next(self):
        k = jax.random.fold_in(self._key, self._n)
        self._n += 1
        return k

    def conv3x3(self, cin, cout):
        fan_in = 9 * cin
        w = jax.random.normal(self._next(), (3, 3, cin, cout), jnp.float32)
        w = w * math.sqrt(2.0 / fan_in)
        return w.reshape(9, cin, cout).astype(jnp.bfloat16)   # pre-reshaped

    def conv1x1(self, cin, cout):
        w = jax.random.normal(self._next(), (cin, cout), jnp.float32)
        return (w * math.sqrt(2.0 / cin)).astype(jnp.bfloat16)

    def bn(self, c):
        # eval-mode BN folded into a packed (2, c) scale/bias operand
        gamma = 1.0 + 0.05 * jax.random.normal(self._next(), (c,), jnp.float32)
        beta = 0.05 * jax.random.normal(self._next(), (c,), jnp.float32)
        mean = jnp.zeros((c,), jnp.float32)
        var = jnp.ones((c,), jnp.float32)
        scale = gamma / jnp.sqrt(var + BN_EPS)
        bias = beta - mean * scale
        return jnp.stack([scale, bias])

    def bias_sb(self, c):
        b = 0.01 * jax.random.normal(self._next(), (c,), jnp.float32)
        return jnp.stack([jnp.ones((c,), jnp.float32), b])


def init_pspnet(seed=0, num_classes=2, bins=(1, 2, 3, 6)):
    pg = ParamGen(seed)
    params = {}
    params["layer0"] = [
        {"w": pg.conv3x3(3, 64), "sb": pg.bn(64)},
        {"w": pg.conv3x3(64, 64), "sb": pg.bn(64)},
        {"w": pg.conv3x3(64, 128), "sb": pg.bn(128)},
    ]

    def make_layer(inplanes, planes, blocks, stride, dilation):
        # dilation > 1 models __replace_conv_with_dilated_conv (stride -> 1)
        c2_stride = 1 if dilation > 1 else stride
        d_stride = 1 if dilation > 1 else stride
        blks = [{
            "c1_w": pg.conv1x1(inplanes, planes), "c1_sb": pg.bn(planes),
            "c2_w": pg.conv3x3(planes, planes), "c2_sb": pg.bn(planes),
            "c3_w": pg.conv1x1(planes, planes * 4), "c3_sb": pg.bn(planes * 4),
            "d_w": pg.conv1x1(inplanes, planes * 4), "d_sb": pg.bn(planes * 4),
        }]
        cfgs = [(c2_stride, dilation, True, d_stride)]
        ip = planes * 4
        for _ in range(blocks - 1):
            blks.append({
                "c1_w": pg.conv1x1(ip, planes), "c1_sb": pg.bn(planes),
                "c2_w": pg.conv3x3(planes, planes), "c2_sb": pg.bn(planes),
                "c3_w": pg.conv1x1(planes, planes * 4),
                "c3_sb": pg.bn(planes * 4),
            })
            cfgs.append((1, dilation, False, 1))
        return blks, tuple(cfgs), ip

    params["layer1"], cfg1, ip = make_layer(128, 64, 3, 1, 1)
    params["layer2"], cfg2, ip = make_layer(ip, 128, 4, 2, 1)
    params["layer3"], cfg3, ip = make_layer(ip, 256, 6, 2, 2)
    params["layer4"], cfg4, ip = make_layer(ip, 512, 3, 2, 4)

    red = 2048 // len(bins)
    params["ppm"] = [{"w": pg.conv1x1(2048, red), "sb": pg.bn(red)}
                     for _ in bins]
    params["cls"] = {"w1": pg.conv3x3(4096, 512), "sb1": pg.bn(512),
                     "w2": pg.conv1x1(512, num_classes),
                     "sb2": pg.bias_sb(num_classes)}
    # aux params mirror the module but are unused on the inference path
    params["aux"] = {"w1": pg.conv3x3(1024, 256), "sb1": pg.bn(256),
                     "w2": pg.conv1x1(256, num_classes),
                     "sb2": pg.bias_sb(num_classes)}
    cfg = {"layer0_strides": (2, 1, 1),
           "layers": (cfg1, cfg2, cfg3, cfg4),
           "bins": tuple(bins)}
    return params, cfg


# ----------------------------------------------------------------------------
# Forward pass (inference mode, y=None)
# ----------------------------------------------------------------------------
def bottleneck_fwd(x, p, bcfg):
    c2_stride, dilation, has_down, d_stride = bcfg
    out = conv1x1_fused(x, p["c1_w"], p["c1_sb"], relu=True)
    if c2_stride == 1:
        out = conv3x3_s1_fused(out, p["c2_w"], p["c2_sb"], dilation=dilation,
                               padding=dilation, relu=True)
    else:
        out = conv3x3_im2col(out, p["c2_w"], p["c2_sb"], stride=c2_stride,
                             padding=dilation, dilation=dilation, relu=True)
    if has_down:
        identity = conv1x1_fused(x, p["d_w"], p["d_sb"], stride=d_stride,
                                 relu=False)
    else:
        identity = x
    # conv3: BN + residual add + ReLU all fused in the matmul epilogue
    return conv1x1_fused(out, p["c3_w"], p["c3_sb"], relu=True,
                         residual=identity)


def pspnet_forward(params, x_nchw, *, cfg, zoom_factor=8, use_ppm=True):
    N, C, H, W = x_nchw.shape
    assert (H - 1) % 8 == 0 and (W - 1) % 8 == 0
    x = jnp.transpose(x_nchw, (0, 2, 3, 1)).astype(jnp.bfloat16)   # -> NHWC

    # layer0 (deep_base): conv3x3 s2 3->64, conv3x3 64->64, conv3x3 64->128
    for blk, st in zip(params["layer0"], cfg["layer0_strides"]):
        if st == 1:
            x = conv3x3_s1_fused(x, blk["w"], blk["sb"], dilation=1,
                                 padding=1, relu=True)
        else:
            x = conv3x3_im2col(x, blk["w"], blk["sb"], stride=st, padding=1,
                               dilation=1, relu=True)
    x = max_pool_3x3_s2_p1(x)

    for blk, bc in zip(params["layer1"], cfg["layers"][0]):
        x = bottleneck_fwd(x, blk, bc)
    for blk, bc in zip(params["layer2"], cfg["layers"][1]):
        x = bottleneck_fwd(x, blk, bc)
    for blk, bc in zip(params["layer3"], cfg["layers"][2]):
        x = bottleneck_fwd(x, blk, bc)
    features = x                                        # (N, h, w, 1024)

    main = features
    for blk, bc in zip(params["layer4"], cfg["layers"][3]):
        main = bottleneck_fwd(main, blk, bc)            # (N, h, w, 2048)

    if use_ppm:
        fh, fw = main.shape[1], main.shape[2]
        branches = [main]
        for blk, b in zip(params["ppm"], cfg["bins"]):
            pooled = adaptive_avg_pool(main, b, b)
            pooled = conv1x1_fused(pooled.astype(jnp.bfloat16), blk["w"],
                                   blk["sb"], relu=True)
            branches.append(bilinear_resize(pooled, fh, fw)
                            .astype(jnp.bfloat16))
        main = jnp.concatenate(branches, axis=-1)       # (N, h, w, 4096)

    # cls head: conv3x3 + BN + ReLU + Dropout2d (identity in eval) + conv1x1
    pc = params["cls"]
    y = conv3x3_s1_fused(main, pc["w1"], pc["sb1"], dilation=1, padding=1,
                         relu=True)
    logits = conv1x1_fused(y, pc["w2"], pc["sb2"], relu=False,
                           out_dtype=jnp.float32)

    # aux head (on layer3 output) is skipped: its logits are never returned
    # and aux_loss is None when y is None — matching the PyTorch contract.
    # TODO(synk): CrossEntropyLoss / aux loss (training path, y != None) not
    # implemented; inference path returns (logits, yhat, None, None).

    Ho = (H - 1) // 8 * zoom_factor + 1
    Wo = (W - 1) // 8 * zoom_factor + 1
    logits = bilinear_resize(logits, Ho, Wo)

    logits_nchw = jnp.transpose(logits, (0, 3, 1, 2))
    yhat = jnp.argmax(logits_nchw, axis=1)
    return logits_nchw, yhat, None, None


# ----------------------------------------------------------------------------
if __name__ == "__main__":
    # Small input consistent with the module: C=3, (H-1)%8==0, (W-1)%8==0.
    N, C, H, W = 2, 3, 17, 17
    num_classes = 2
    x = jax.random.normal(jax.random.PRNGKey(0), (N, C, H, W), jnp.float32)

    params, cfg = init_pspnet(seed=0, num_classes=num_classes,
                              bins=(1, 2, 3, 6))

    logits, yhat, main_loss, aux_loss = pspnet_forward(
        params, x, cfg=cfg, zoom_factor=8, use_ppm=True)
    logits = jax.block_until_ready(logits)
    yhat = jax.block_until_ready(yhat)

    assert logits.shape == (N, num_classes, H, W), logits.shape
    assert yhat.shape == (N, H, W), yhat.shape
    assert bool(jnp.all(jnp.isfinite(logits)))
    assert main_loss is None and aux_loss is None
    print("KERNEL_OK")
</pallas_src>

<mosaic_0001>
module attributes {stable_mosaic.version = 11 : i64} {
  func.func @_mm_kernel(%arg0: i32, %arg1: i32, %arg2: i32, %arg3: memref<162x128xbf16, #tpu.memory_space<vmem>>, %arg4: memref<128x64xbf16, #tpu.memory_space<vmem>>, %arg5: memref<2x64xf32, #tpu.memory_space<vmem>>, %arg6: memref<162x64xbf16, #tpu.memory_space<vmem>>, %arg7: memref<162x64xf32, #tpu.memory_space<vmem>>) attributes {dimension_semantics = [#tpu.dimension_semantics<parallel>, #tpu.dimension_semantics<parallel>, #tpu.dimension_semantics<arbitrary>], iteration_bounds = array<i64: 1, 1, 1>, scalar_prefetch = 0 : i64, scratch_operands = 1 : i64, tpu.core_type = #tpu.core_type<tc>, window_params = [{transform_indices = @transform_0, window_bounds = array<i64: 162, 128>}, {transform_indices = @transform_1, window_bounds = array<i64: 128, 64>}, {transform_indices = @transform_2, window_bounds = array<i64: 2, 64>}, {transform_indices = @transform_3, window_bounds = array<i64: 162, 64>}]} {
    %c0_i32 = arith.constant 0 : i32
    %0 = arith.cmpi eq, %arg2, %c0_i32 : i32
    %1 = arith.extui %0 : i1 to i32
    %c0_i32_0 = arith.constant 0 : i32
    %2 = arith.cmpi ne, %1, %c0_i32_0 : i32
    scf.if %2 {
      %cst_10 = arith.constant 0.000000e+00 : f32
      %12 = vector.broadcast %cst_10 : f32 to vector<162x64xf32>
      %c0_11 = arith.constant 0 : index
      %c0_12 = arith.constant 0 : index
      %13 = vector.load %arg7[%c0_11, %c0_12] : memref<162x64xf32, #tpu.memory_space<vmem>>, vector<162x64xf32>
      tpu.vector_store %arg7[%c0_11, %c0_12], %12 {strides = array<i32>} : memref<162x64xf32, #tpu.memory_space<vmem>>, vector<162x64xf32>,
    } else {
    }
    %c0 = arith.constant 0 : index
    %c0_1 = arith.constant 0 : index
    %3 = vector.load %arg7[%c0, %c0_1] : memref<162x64xf32, #tpu.memory_space<vmem>>, vector<162x64xf32>
    %c0_2 = arith.constant 0 : index
    %c0_3 = arith.constant 0 : index
    %4 = vector.load %arg3[%c0_2, %c0_3] : memref<162x128xbf16, #tpu.memory_space<vmem>>, vector<162x128xbf16>
    %c0_4 = arith.constant 0 : index
    %c0_5 = arith.constant 0 : index
    %5 = vector.load %arg4[%c0_4, %c0_5] : memref<128x64xbf16, #tpu.memory_space<vmem>>, vector<128x64xbf16>
    %cst = arith.constant dense<0.000000e+00> : vector<162x64xf32>
    %6 = tpu.matmul %4, %5, %cst {dimension_numbers = #tpu.dot_dimension_numbers<[1], [0], [0], [1], [0, 0, 1, 1], [], []>} : vector<162x128xbf16>, vector<128x64xbf16>, vector<162x64xf32> -> vector<162x64xf32>
    %7 = arith.addf %3, %6 : vector<162x64xf32>
    %c0_6 = arith.constant 0 : index
    %c0_7 = arith.constant 0 : index
    %8 = vector.load %arg7[%c0_6, %c0_7] : memref<162x64xf32, #tpu.memory_space<vmem>>, vector<162x64xf32>
    tpu.vector_store %arg7[%c0_6, %c0_7], %7 {strides = array<i32>} : memref<162x64xf32, #tpu.memory_space<vmem>>, vector<162x64xf32>,
    %c0_i32_8 = arith.constant 0 : i32
    %9 = arith.cmpi eq, %arg2, %c0_i32_8 : i32
    %10 = arith.extui %9 : i1 to i32
    %c0_i32_9 = arith.constant 0 : i32
    %11 = arith.cmpi ne, %10, %c0_i32_9 : i32
    scf.if %11 {
      %c0_10 = arith.constant 0 : index
      %c0_11 = arith.constant 0 : index
      %12 = vector.load %arg7[%c0_10, %c0_11] : memref<162x64xf32, #tpu.memory_space<vmem>>, vector<162x64xf32>
      %c0_12 = arith.constant 0 : index
      %c0_13 = arith.constant 0 : index
      %13 = vector.load %arg5[%c0_12, %c0_13] : memref<2x64xf32, #tpu.memory_space<vmem>>, vector<1x64xf32>
      %14 = vector.broadcast %13 : vector<1x64xf32> to vector<162x64xf32>
      %15 = arith.mulf %12, %14 : vector<162x64xf32>
      %c1 = arith.constant 1 : index
      %c0_14 = arith.constant 0 : index
      %16 = vector.load %arg5[%c1, %c0_14] : memref<2x64xf32, #tpu.memory_space<vmem>>, vector<1x64xf32>
      %17 = vector.broadcast %16 : vector<1x64xf32> to vector<162x64xf32>
      %18 = arith.addf %15, %17 : vector<162x64xf32>
      %cst_15 = arith.constant 0.000000e+00 : f32
      %19 = vector.broadcast %cst_15 : f32 to vector<162x64xf32>
      %20 = arith.maximumf %18, %19 : vector<162x64xf32>
      %21 = arith.truncf %20 : vector<162x64xf32> to vector<162x64xbf16>
      %c0_16 = arith.constant 0 : index
      %c0_17 = arith.constant 0 : index
      %22 = vector.load %arg6[%c0_16, %c0_17] : memref<162x64xbf16, #tpu.memory_space<vmem>>, vector<162x64xbf16>
      tpu.vector_store %arg6[%c0_16, %c0_17], %21 {strides = array<i32>} : memref<162x64xbf16, #tpu.memory_space<vmem>>, vector<162x64xbf16>,
    } else {
    }
    return
  }
  func.func @transform_0(%arg0: i32, %arg1: i32, %arg2: i32) -> (i32, i32) {
    %c0_i32 = arith.constant 0 : i32
    return %arg0, %arg2 : i32, i32
  }
  func.func @transform_1(%arg0: i32, %arg1: i32, %arg2: i32) -> (i32, i32) {
    %c0_i32 = arith.constant 0 : i32
    return %arg2, %arg1 : i32, i32
  }
  func.func @transform_2(%arg0: i32, %arg1: i32, %arg2: i32) -> (i32, i32) {
    %c0_i32 = arith.constant 0 : i32
    %c0_i32_0 = arith.constant 0 : i32
    return %c0_i32, %arg1 : i32, i32
  }
  func.func @transform_3(%arg0: i32, %arg1: i32, %arg2: i32) -> (i32, i32) {
    %c0_i32 = arith.constant 0 : i32
    return %arg0, %arg1 : i32, i32
  }
}

</mosaic_0001>

<llo_original>
// kernel: conv3x3_im2col.1
$region0: #{conv3x3_im2col.1}
  #allocation0 [shape = 'u32[]', space=smem, size = 0x4, offset = 0x4, fixed_abs, tag = 'smem constant byte address 0x4 - core index']
  #allocation1 [shape = 'u32[144,128]{1,0:T(1,128)}', space=vmem, size = 0x12000, scoped, tag = 'internal scratch']
  #allocation2 [shape = 'f32[162,64]{1,0:T(8,128)}', space=vmem, size = 0x15000, scoped, tag = 'scratch operand']
  %s0 = inlined_call_operand.vmem [shape: bf16[162,128], index: 0, kind: input, shape index: {}]
  %s1 = inlined_call_operand.vmem [shape: bf16[128,64], index: 1, kind: input, shape index: {}]
  %s2 = inlined_call_operand.vmem [shape: f32[2,64], index: 2, kind: input, shape index: {}]
  %s3 = inlined_call_operand.vmem [shape: bf16[162,64], index: 3, kind: output, shape index: {}]
  %s4 = sld [smem:[#allocation0]]
  $region30: #{conv3x3_im2col.1} parent=0
    _
  %s6 = ssub.s32 1, %s4
  %s7 = scalar_select 0, %s6, %s4
  // Predicated region
  $region2: #{conv3x3_im2col.1} parent=0 // pred_check
    _
  $region3: #{conv3x3_im2col.1} parent=0 // pred_check_branch
    %9 = sbr.rel (0) target = $region5
  $region4: #{conv3x3_im2col.1} parent=0 // pred_region
    _
  $region5: #{conv3x3_im2col.1} parent=0 // pred_fallthru
    _
  // Predicated region
  $region6: #{conv3x3_im2col.1} parent=0 // pred_check
    _
  $region7: #{conv3x3_im2col.1} parent=0 // pred_check_branch
    %11 = sbr.rel (0) target = $region9
  $region8: #{conv3x3_im2col.1} parent=0 // pred_region
    _
  $region9: #{conv3x3_im2col.1} parent=0 // pred_fallthru
    _
  // Predicated region
  $region10: #{conv3x3_im2col.1} parent=0 // pred_check
    _
  $region11: #{conv3x3_im2col.1} parent=0 // pred_check_branch
    %13 = sbr.rel (0) target = $region13
  $region12: #{conv3x3_im2col.1} parent=0 // pred_region
    _
  $region13: #{conv3x3_im2col.1} parent=0 // pred_fallthru
    _
  %p15 = scmp.eq.s32.totalorder 0, 0
  // Predicated region
  $region14: #{conv3x3_im2col.1} parent=0 // pred_check
    %p16 = pneg %p15
  $region15: #{conv3x3_im2col.1} parent=0 // pred_check_branch
    %18 = sbr.rel (%p16) target = $region17
  $region16: #{conv3x3_im2col.1} parent=0 // pred_region
    %vm19 = vcmask 523264
    %20 = vst.msk [vmem:[#allocation2] sm:$0xff] %vm19, 0.0
    %21 = vst.msk [vmem:[#allocation2 + $0x8] sm:$0xff] %vm19, 0.0
    %22 = vst.msk [vmem:[#allocation2 + $0x10] sm:$0xff] %vm19, 0.0
    %23 = vst.msk [vmem:[#allocation2 + $0x18] sm:$0xff] %vm19, 0.0
    %24 = vst.msk [vmem:[#allocation2 + $0x20] sm:$0xff] %vm19, 0.0
    %25 = vst.msk [vmem:[#allocation2 + $0x28] sm:$0xff] %vm19, 0.0
    %26 = vst.msk [vmem:[#allocation2 + $0x30] sm:$0xff] %vm19, 0.0
    %27 = vst.msk [vmem:[#allocation2 + $0x38] sm:$0xff] %vm19, 0.0
    %28 = vst.msk [vmem:[#allocation2 + $0x40] sm:$0xff] %vm19, 0.0
    %29 = vst.msk [vmem:[#allocation2 + $0x48] sm:$0xff] %vm19, 0.0
    %30 = vst.msk [vmem:[#allocation2 + $0x50] sm:$0xff] %vm19, 0.0
    %31 = vst.msk [vmem:[#allocation2 + $0x58] sm:$0xff] %vm19, 0.0
    %32 = vst.msk [vmem:[#allocation2 + $0x60] sm:$0xff] %vm19, 0.0
    %33 = vst.msk [vmem:[#allocation2 + $0x68] sm:$0xff] %vm19, 0.0
    %34 = vst.msk [vmem:[#allocation2 + $0x70] sm:$0xff] %vm19, 0.0
    %35 = vst.msk [vmem:[#allocation2 + $0x78] sm:$0xff] %vm19, 0.0
    %36 = vst.msk [vmem:[#allocation2 + $0x80] sm:$0xff] %vm19, 0.0
    %37 = vst.msk [vmem:[#allocation2 + $0x88] sm:$0xff] %vm19, 0.0
    %38 = vst.msk [vmem:[#allocation2 + $0x90] sm:$0xff] %vm19, 0.0
    %39 = vst.msk [vmem:[#allocation2 + $0x98] sm:$0xff] %vm19, 0.0
    %vm40 = vcmask 517120
    %41 = vst.msk [vmem:[#allocation2 + $0xa0] sm:$0x3] %vm40, 0.0
  $region17: #{conv3x3_im2col.1} parent=0 // pred_fallthru
    _
  %v42 = vld [vmem:[#allocation2] sm:$0xff]
  %v43 = vld [vmem:[#allocation2 + $0x8] sm:$0xff]
  %v44 = vld [vmem:[#allocation2 + $0x10] sm:$0xff]
  %v45 = vld [vmem:[#allocation2 + $0x18] sm:$0xff]
  %v46 = vld [vmem:[#allocation2 + $0x20] sm:$0xff]
  %v47 = vld [vmem:[#allocation2 + $0x28] sm:$0xff]
  %v48 = vld [vmem:[#allocation2 + $0x30] sm:$0xff]
  %v49 = vld [vmem:[#allocation2 + $0x38] sm:$0xff]
  %v50 = vld [vmem:[#allocation2 + $0x40] sm:$0xff]
  %v51 = vld [vmem:[#allocation2 + $0x48] sm:$0xff]
  %v52 = vld [vmem:[#allocation2 + $0x50] sm:$0xff]
  %v53 = vld [vmem:[#allocation2 + $0x58] sm:$0xff]
  %v54 = vld [vmem:[#allocation2 + $0x60] sm:$0xff]
  %v55 = vld [vmem:[#allocation2 + $0x68] sm:$0xff]
  %v56 = vld [vmem:[#allocation2 + $0x70] sm:$0xff]
  %v57 = vld [vmem:[#allocation2 + $0x78] sm:$0xff]
  %v58 = vld [vmem:[#allocation2 + $0x80] sm:$0xff]
  %v59 = vld [vmem:[#allocation2 + $0x88] sm:$0xff]
  %v60 = vld [vmem:[#allocation2 + $0x90] sm:$0xff]
  %v61 = vld [vmem:[#allocation2 + $0x98] sm:$0xff]
  %v62 = vld [vmem:[#allocation2 + $0xa0] sm:$0x3]
  %v63 = vld [vmem:[%s0] sm:$0xf]
  %v64 = vld [vmem:[%s0 + $0x4] sm:$0xf]
  %v65 = vld [vmem:[%s0 + $0x8] sm:$0xf]
  %v66 = vld [vmem:[%s0 + $0xc] sm:$0xf]
  %v67 = vld [vmem:[%s0 + $0x10] sm:$0xf]
  %v68 = vld [vmem:[%s0 + $0x14] sm:$0xf]
  %v69 = vld [vmem:[%s0 + $0x18] sm:$0xf]
  %v70 = vld [vmem:[%s0 + $0x1c] sm:$0xf]
  %v71 = vld [vmem:[%s0 + $0x20] sm:$0xf]
  %v72 = vld [vmem:[%s0 + $0x24] sm:$0xf]
  %v73 = vld [vmem:[%s0 + $0x28] sm:$0xf]
  %v74 = vld [vmem:[%s0 + $0x2c] sm:$0xf]
  %v75 = vld [vmem:[%s0 + $0x30] sm:$0xf]
  %v76 = vld [vmem:[%s0 + $0x34] sm:$0xf]
  %v77 = vld [vmem:[%s0 + $0x38] sm:$0xf]
  %v78 = vld [vmem:[%s0 + $0x3c] sm:$0xf]
  %v79 = vld [vmem:[%s0 + $0x40] sm:$0xf]
  %v80 = vld [vmem:[%s0 + $0x44] sm:$0xf]
  %v81 = vld [vmem:[%s0 + $0x48] sm:$0xf]
  %v82 = vld [vmem:[%s0 + $0x4c] sm:$0xf]
  %v83 = vld [vmem:[%s0 + $0x50] sm:$0x1]
  %v84 = vld [vmem:[%s1] sm:$0xf]
  %v85 = vld [vmem:[%s1 + $0x4] sm:$0xf]
  %v86 = vld [vmem:[%s1 + $0x8] sm:$0xf]
  %v87 = vld [vmem:[%s1 + $0xc] sm:$0xf]
  %v88 = vld [vmem:[%s1 + $0x10] sm:$0xf]
  %v89 = vld [vmem:[%s1 + $0x14] sm:$0xf]
  %v90 = vld [vmem:[%s1 + $0x18] sm:$0xf]
  %v91 = vld [vmem:[%s1 + $0x1c] sm:$0xf]
  %v92 = vld [vmem:[%s1 + $0x20] sm:$0xf]
  %v93 = vld [vmem:[%s1 + $0x24] sm:$0xf]
  %v94 = vld [vmem:[%s1 + $0x28] sm:$0xf]
  %v95 = vld [vmem:[%s1 + $0x2c] sm:$0xf]
  %v96 = vld [vmem:[%s1 + $0x30] sm:$0xf]
  %v97 = vld [vmem:[%s1 + $0x34] sm:$0xf]
  %v98 = vld [vmem:[%s1 + $0x38] sm:$0xf]
  %v99 = vld [vmem:[%s1 + $0x3c] sm:$0xf]
  %v121 = vunpack.c.l.b16 %v63
  %v122 = vunpack.c.l.b16 %v64
  %v123 = vunpack.c.l.b16 %v65
  %v124 = vunpack.c.l.b16 %v66
  %v125 = vunpack.c.l.b16 %v67
  %v126 = vunpack.c.l.b16 %v68
  %v127 = vunpack.c.l.b16 %v69
  %v128 = vunpack.c.l.b16 %v70
  %v129 = vunpack.c.l.b16 %v71
  %v130 = vunpack.c.l.b16 %v72
  %v131 = vunpack.c.l.b16 %v73
  %v132 = vunpack.c.l.b16 %v74
  %v133 = vunpack.c.l.b16 %v75
  %v134 = vunpack.c.l.b16 %v76
  %v135 = vunpack.c.l.b16 %v77
  %v136 = vunpack.c.l.b16 %v78
  %v137 = vunpack.c.l.b16 %v79
  %v138 = vunpack.c.l.b16 %v80
  %v139 = vunpack.c.l.b16 %v81
  %v140 = vunpack.c.l.b16 %v82
  %v141 = vunpack.c.l.b16 %v83
  %v142 = vpack.c.b16 %v122, %v121
  %v143 = vpack.c.b16 %v124, %v123
  %v144 = vpack.c.b16 %v126, %v125
  %v145 = vpack.c.b16 %v128, %v127
  %v146 = vpack.c.b16 %v130, %v129
  %v147 = vpack.c.b16 %v132, %v131
  %v148 = vpack.c.b16 %v134, %v133
  %v149 = vpack.c.b16 %v136, %v135
  %v150 = vpack.c.b16 %v138, %v137
  %v151 = vpack.c.b16 %v140, %v139
  %v152 = vpack.c.b16 %v141, %v141
  %v180 = vunpack.c.l.b16 %v84
  %v181 = vunpack.c.l.b16 %v85
  %v182 = vunpack.c.l.b16 %v86
  %v183 = vunpack.c.l.b16 %v87
  %v184 = vunpack.c.l.b16 %v88
  %v185 = vunpack.c.l.b16 %v89
  %v186 = vunpack.c.l.b16 %v90
  %v187 = vunpack.c.l.b16 %v91
  %v188 = vunpack.c.l.b16 %v92
  %v189 = vunpack.c.l.b16 %v93
  %v190 = vunpack.c.l.b16 %v94
  %v191 = vunpack.c.l.b16 %v95
  %v192 = vunpack.c.l.b16 %v96
  %v193 = vunpack.c.l.b16 %v97
  %v194 = vunpack.c.l.b16 %v98
  %v195 = vunpack.c.l.b16 %v99
  %v196 = vpack.c.b16 %v181, %v180
  %v197 = vpack.c.b16 %v183, %v182
  %v198 = vpack.c.b16 %v185, %v184
  %v199 = vpack.c.b16 %v187, %v186
  %v200 = vpack.c.b16 %v189, %v188
  %v201 = vpack.c.b16 %v191, %v190
  %v202 = vpack.c.b16 %v193, %v192
  %v203 = vpack.c.b16 %v195, %v194
  %212 = vmatprep.subr.bf16.mxu0 0
  %213 = vmatpush1.bf16.msra.mxu0 %v196
  %214 = vmatprep.subr.bf16.mxu0 0
  %215 = vmatpush1.bf16.msra.mxu0 %v197
  %216 = vmatprep.subr.bf16.mxu0 0
  %217 = vmatpush1.bf16.msra.mxu0 %v198
  %218 = vmatprep.subr.bf16.mxu0 0
  %219 = vmatpush1.bf16.msra.mxu0 %v199
  %220 = vmatprep.subr.bf16.mxu0 0
  %221 = vmatpush1.bf16.msra.mxu0 %v200
  %222 = vmatprep.subr.bf16.mxu0 0
  %223 = vmatpush1.bf16.msra.mxu0 %v201
  %224 = vmatprep.subr.bf16.mxu0 0
  %225 = vmatpush1.bf16.msra.mxu0 %v202
  %226 = vmatprep.subr.bf16.mxu0 0
  %227 = vmatpush1.bf16.msra.mxu0 %v203
  %228 = vmatprep.subr.bf16.mxu0 0
  %229 = vmatpush1.bf16.msra.mxu0 0
  %230 = vmatprep.subr.bf16.mxu0 0
  %231 = vmatpush1.bf16.msra.mxu0 0
  %232 = vmatprep.subr.bf16.mxu0 0
  %233 = vmatpush1.bf16.msra.mxu0 0
  %234 = vmatprep.subr.bf16.mxu0 0
  %235 = vmatpush1.bf16.msra.mxu0 0
  %236 = vmatprep.subr.bf16.mxu0 0
  %237 = vmatpush1.bf16.msra.mxu0 0
  %238 = vmatprep.subr.bf16.mxu0 0
  %239 = vmatpush1.bf16.msra.mxu0 0
  %240 = vmatprep.subr.bf16.mxu0 0
  %241 = vmatpush1.bf16.msra.mxu0 0
  %242 = vmatprep.subr.bf16.mxu0 0
  %243 = vmatpush1.bf16.msra.mxu0 0
  %244 = vmatprep.mubr.bf16.mxu0 0
  %245 = vmatmul.mubr.bf16.gmra.mrb[0].mxu0 %v142
  %v246 = vpop.f32.mrb[0].mxu0
  %v247 = vadd.f32 0.0, %v246
  %v248 = vpop.f32.mrb[0].mxu0
  %v249 = vpop.f32.mrb[0].mxu0
  %v250 = vadd.f32 0.0, %v249
  %v251 = vpop.f32.mrb[0].mxu0
  %252 = vmatprep.mubr.bf16.mxu0 0
  %253 = vmatmul.mubr.bf16.gmra.mrb[0].mxu0 %v143
  %v254 = vpop.f32.mrb[0].mxu0
  %v255 = vadd.f32 0.0, %v254
  %v256 = vpop.f32.mrb[0].mxu0
  %v257 = vpop.f32.mrb[0].mxu0
  %v258 = vadd.f32 0.0, %v257
  %v259 = vpop.f32.mrb[0].mxu0
  %260 = vmatprep.mubr.bf16.mxu0 0
  %261 = vmatmul.mubr.bf16.gmra.mrb[0].mxu0 %v144
  %v262 = vpop.f32.mrb[0].mxu0
  %v263 = vadd.f32 0.0, %v262
  %v264 = vpop.f32.mrb[0].mxu0
  %v265 = vpop.f32.mrb[0].mxu0
  %v266 = vadd.f32 0.0, %v265
  %v267 = vpop.f32.mrb[0].mxu0
  %268 = vmatprep.mubr.bf16.mxu0 0
  %269 = vmatmul.mubr.bf16.gmra.mrb[0].mxu0 %v145
  %v270 = vpop.f32.mrb[0].mxu0
  %v271 = vadd.f32 0.0, %v270
  %v272 = vpop.f32.mrb[0].mxu0
  %v273 = vpop.f32.mrb[0].mxu0
  %v274 = vadd.f32 0.0, %v273
  %v275 = vpop.f32.mrb[0].mxu0
  %276 = vmatprep.mubr.bf16.mxu0 0
  %277 = vmatmul.mubr.bf16.gmra.mrb[0].mxu0 %v146
  %v278 = vpop.f32.mrb[0].mxu0
  %v279 = vadd.f32 0.0, %v278
  %v280 = vpop.f32.mrb[0].mxu0
  %v281 = vpop.f32.mrb[0].mxu0
  %v282 = vadd.f32 0.0, %v281
  %v283 = vpop.f32.mrb[0].mxu0
  %284 = vmatprep.mubr.bf16.mxu0 0
  %285 = vmatmul.mubr.bf16.gmra.mrb[0].mxu0 %v147
  %v286 = vpop.f32.mrb[0].mxu0
  %v287 = vadd.f32 0.0, %v286
  %v288 = vpop.f32.mrb[0].mxu0
  %v289 = vpop.f32.mrb[0].mxu0
  %v290 = vadd.f32 0.0, %v289
  %v291 = vpop.f32.mrb[0].mxu0
  %292 = vmatprep.mubr.bf16.mxu0 0
  %293 = vmatmul.mubr.bf16.gmra.mrb[0].mxu0 %v148
  %v294 = vpop.f32.mrb[0].mxu0
  %v295 = vadd.f32 0.0, %v294
  %v296 = vpop.f32.mrb[0].mxu0
  %v297 = vpop.f32.mrb[0].mxu0
  %v298 = vadd.f32 0.0, %v297
  %v299 = vpop.f32.mrb[0].mxu0
  %300 = vmatprep.mubr.bf16.mxu0 0
  %301 = vmatmul.mubr.bf16.gmra.mrb[0].mxu0 %v149
  %v302 = vpop.f32.mrb[0].mxu0
  %v303 = vadd.f32 0.0, %v302
  %v304 = vpop.f32.mrb[0].mxu0
  %v305 = vpop.f32.mrb[0].mxu0
  %v306 = vadd.f32 0.0, %v305
  %v307 = vpop.f32.mrb[0].mxu0
  %308 = vmatprep.mubr.bf16.mxu0 0
  %309 = vmatmul.mubr.bf16.gmra.mrb[0].mxu0 %v150
  %v310 = vpop.f32.mrb[0].mxu0
  %v311 = vadd.f32 0.0, %v310
  %v312 = vpop.f32.mrb[0].mxu0
  %v313 = vpop.f32.mrb[0].mxu0
  %v314 = vadd.f32 0.0, %v313
  %v315 = vpop.f32.mrb[0].mxu0
  %316 = vmatprep.mubr.bf16.mxu0 0
  %317 = vmatmul.mubr.bf16.gmra.mrb[0].mxu0 %v151
  %v318 = vpop.f32.mrb[0].mxu0
  %v319 = vadd.f32 0.0, %v318
  %v320 = vpop.f32.mrb[0].mxu0
  %v321 = vpop.f32.mrb[0].mxu0
  %v322 = vadd.f32 0.0, %v321
  %v323 = vpop.f32.mrb[0].mxu0
  %324 = vmatprep.mubr.bf16.mxu0 0
  %325 = vmatmul.mubr.bf16.gmra.mrb[0].mxu0 %v152
  %v326 = vpop.f32.mrb[0].mxu0
  %v327 = vadd.f32 0.0, %v326
  %v328 = vpop.f32.mrb[0].mxu0
  %v329 = vpop.f32.mrb[0].mxu0
  %v330 = vpop.f32.mrb[0].mxu0
  %331 = vdwg.mxu0
  %v332 = vadd.f32 %v42, %v247
  %v333 = vadd.f32 %v43, %v250
  %v334 = vadd.f32 %v44, %v255
  %v335 = vadd.f32 %v45, %v258
  %v336 = vadd.f32 %v46, %v263
  %v337 = vadd.f32 %v47, %v266
  %v338 = vadd.f32 %v48, %v271
  %v339 = vadd.f32 %v49, %v274
  %v340 = vadd.f32 %v50, %v279
  %v341 = vadd.f32 %v51, %v282
  %v342 = vadd.f32 %v52, %v287
  %v343 = vadd.f32 %v53, %v290
  %v344 = vadd.f32 %v54, %v295
  %v345 = vadd.f32 %v55, %v298
  %v346 = vadd.f32 %v56, %v303
  %v347 = vadd.f32 %v57, %v306
  %v348 = vadd.f32 %v58, %v311
  %v349 = vadd.f32 %v59, %v314
  %v350 = vadd.f32 %v60, %v319
  %v351 = vadd.f32 %v61, %v322
  %v352 = vadd.f32 %v62, %v327
  %vm353 = vcmask 523264
  %354 = vst.msk [vmem:[#allocation2] sm:$0xff] %vm353, %v332
  %355 = vst.msk [vmem:[#allocation2 + $0x8] sm:$0xff] %vm353, %v333
  %356 = vst.msk [vmem:[#allocation2 + $0x10] sm:$0xff] %vm353, %v334
  %357 = vst.msk [vmem:[#allocation2 + $0x18] sm:$0xff] %vm353, %v335
  %358 = vst.msk [vmem:[#allocation2 + $0x20] sm:$0xff] %vm353, %v336
  %359 = vst.msk [vmem:[#allocation2 + $0x28] sm:$0xff] %vm353, %v337
  %360 = vst.msk [vmem:[#allocation2 + $0x30] sm:$0xff] %vm353, %v338
  %361 = vst.msk [vmem:[#allocation2 + $0x38] sm:$0xff] %vm353, %v339
  %362 = vst.msk [vmem:[#allocation2 + $0x40] sm:$0xff] %vm353, %v340
  %363 = vst.msk [vmem:[#allocation2 + $0x48] sm:$0xff] %vm353, %v341
  %364 = vst.msk [vmem:[#allocation2 + $0x50] sm:$0xff] %vm353, %v342
  %365 = vst.msk [vmem:[#allocation2 + $0x58] sm:$0xff] %vm353, %v343
  %366 = vst.msk [vmem:[#allocation2 + $0x60] sm:$0xff] %vm353, %v344
  %367 = vst.msk [vmem:[#allocation2 + $0x68] sm:$0xff] %vm353, %v345
  %368 = vst.msk [vmem:[#allocation2 + $0x70] sm:$0xff] %vm353, %v346
  %369 = vst.msk [vmem:[#allocation2 + $0x78] sm:$0xff] %vm353, %v347
  %370 = vst.msk [vmem:[#allocation2 + $0x80] sm:$0xff] %vm353, %v348
  %371 = vst.msk [vmem:[#allocation2 + $0x88] sm:$0xff] %vm353, %v349
  %372 = vst.msk [vmem:[#allocation2 + $0x90] sm:$0xff] %vm353, %v350
  %373 = vst.msk [vmem:[#allocation2 + $0x98] sm:$0xff] %vm353, %v351
  %vm374 = vcmask 517120
  %375 = vst.msk [vmem:[#allocation2 + $0xa0] sm:$0x3] %vm374, %v352
  // Predicated region
  $region18: #{conv3x3_im2col.1} parent=0 // pred_check
    %p376 = pneg %p15
  $region19: #{conv3x3_im2col.1} parent=0 // pred_check_branch
    %378 = sbr.rel (%p376) target = $region21
  $region20: #{conv3x3_im2col.1} parent=0 // pred_region
    %v379 = vld [vmem:[#allocation2] sm:$0xff]
    %v380 = vld [vmem:[#allocation2 + $0x8] sm:$0xff]
    %v381 = vld [vmem:[#allocation2 + $0x10] sm:$0xff]
    %v382 = vld [vmem:[#allocation2 + $0x18] sm:$0xff]
    %v383 = vld [vmem:[#allocation2 + $0x20] sm:$0xff]
    %v384 = vld [vmem:[#allocation2 + $0x28] sm:$0xff]
    %v385 = vld [vmem:[#allocation2 + $0x30] sm:$0xff]
    %v386 = vld [vmem:[#allocation2 + $0x38] sm:$0xff]
    %v387 = vld [vmem:[#allocation2 + $0x40] sm:$0xff]
    %v388 = vld [vmem:[#allocation2 + $0x48] sm:$0xff]
    %v389 = vld [vmem:[#allocation2 + $0x50] sm:$0xff]
    %v390 = vld [vmem:[#allocation2 + $0x58] sm:$0xff]
    %v391 = vld [vmem:[#allocation2 + $0x60] sm:$0xff]
    %v392 = vld [vmem:[#allocation2 + $0x68] sm:$0xff]
    %v393 = vld [vmem:[#allocation2 + $0x70] sm:$0xff]
    %v394 = vld [vmem:[#allocation2 + $0x78] sm:$0xff]
    %v395 = vld [vmem:[#allocation2 + $0x80] sm:$0xff]
    %v396 = vld [vmem:[#allocation2 + $0x88] sm:$0xff]
    %v397 = vld [vmem:[#allocation2 + $0x90] sm:$0xff]
    %v398 = vld [vmem:[#allocation2 + $0x98] sm:$0xff]
    %v399 = vld [vmem:[#allocation2 + $0xa0] sm:$0x3]
    %v400 = vld [vmem:[%s2] sm:$0x1]
    %v401 = vlaneseq
    %v402 = vshrl.u32 %v401, 7
    %v403 = vsub.s32 0, %v402
    %v404 = vrot.slane %v400, %v403
    %v405 = vmul.f32 %v379, %v404
    %v406 = vmul.f32 %v380, %v404
    %v407 = vmul.f32 %v381, %v404
    %v408 = vmul.f32 %v382, %v404
    %v409 = vmul.f32 %v383, %v404
    %v410 = vmul.f32 %v384, %v404
    %v411 = vmul.f32 %v385, %v404
    %v412 = vmul.f32 %v386, %v404
    %v413 = vmul.f32 %v387, %v404
    %v414 = vmul.f32 %v388, %v404
    %v415 = vmul.f32 %v389, %v404
    %v416 = vmul.f32 %v390, %v404
    %v417 = vmul.f32 %v391, %v404
    %v418 = vmul.f32 %v392, %v404
    %v419 = vmul.f32 %v393, %v404
    %v420 = vmul.f32 %v394, %v404
    %v421 = vmul.f32 %v395, %v404
    %v422 = vmul.f32 %v396, %v404
    %v423 = vmul.f32 %v397, %v404
    %v424 = vmul.f32 %v398, %v404
    %v425 = vmul.f32 %v399, %v404
    %v426 = vld [vmem:[%s2 + $0x1] sm:$0x1]
    %v427 = vlaneseq
    %v428 = vshrl.u32 %v427, 7
    %v429 = vsub.s32 0, %v428
    %v430 = vrot.slane %v426, %v429
    %v431 = vadd.f32 %v405, %v430
    %v432 = vadd.f32 %v406, %v430
    %v433 = vadd.f32 %v407, %v430
    %v434 = vadd.f32 %v408, %v430
    %v435 = vadd.f32 %v409, %v430
    %v436 = vadd.f32 %v410, %v430
    %v437 = vadd.f32 %v411, %v430
    %v438 = vadd.f32 %v412, %v430
    %v439 = vadd.f32 %v413, %v430
    %v440 = vadd.f32 %v414, %v430
    %v441 = vadd.f32 %v415, %v430
    %v442 = vadd.f32 %v416, %v430
    %v443 = vadd.f32 %v417, %v430
    %v444 = vadd.f32 %v418, %v430
    %v445 = vadd.f32 %v419, %v430
    %v446 = vadd.f32 %v420, %v430
    %v447 = vadd.f32 %v421, %v430
    %v448 = vadd.f32 %v422, %v430
    %v449 = vadd.f32 %v423, %v430
    %v450 = vadd.f32 %v424, %v430
    %v451 = vadd.f32 %v425, %v430
    %v452 = vmax.f32 %v431, 0.0
    %v453 = vmax.f32 %v432, 0.0
    %v454 = vmax.f32 %v433, 0.0
    %v455 = vmax.f32 %v434, 0.0
    %v456 = vmax.f32 %v435, 0.0
    %v457 = vmax.f32 %v436, 0.0
    %v458 = vmax.f32 %v437, 0.0
    %v459 = vmax.f32 %v438, 0.0
    %v460 = vmax.f32 %v439, 0.0
    %v461 = vmax.f32 %v440, 0.0
    %v462 = vmax.f32 %v441, 0.0
    %v463 = vmax.f32 %v442, 0.0
    %v464 = vmax.f32 %v443, 0.0
    %v465 = vmax.f32 %v444, 0.0
    %v466 = vmax.f32 %v445, 0.0
    %v467 = vmax.f32 %v446, 0.0
    %v468 = vmax.f32 %v447, 0.0
    %v469 = vmax.f32 %v448, 0.0
    %v470 = vmax.f32 %v449, 0.0
    %v471 = vmax.f32 %v450, 0.0
    %v472 = vmax.f32 %v451, 0.0
    %v473 = vpack.c.bf16 %v453, %v452
    %v474 = vpack.c.bf16 %v455, %v454
    %v475 = vpack.c.bf16 %v457, %v456
    %v476 = vpack.c.bf16 %v459, %v458
    %v477 = vpack.c.bf16 %v461, %v460
    %v478 = vpack.c.bf16 %v463, %v462
    %v479 = vpack.c.bf16 %v465, %v464
    %v480 = vpack.c.bf16 %v467, %v466
    %v481 = vpack.c.bf16 %v469, %v468
    %v482 = vpack.c.bf16 %v471, %v470
    %v483 = vpack.c.bf16 %v472, %v472
    %v495 = vunpack.c.l.b16 %v473
    %v496 = vunpack.c.h.b16 %v473
    %v497 = vunpack.c.l.b16 %v474
    %v498 = vunpack.c.h.b16 %v474
    %v499 = vunpack.c.l.b16 %v475
    %v500 = vunpack.c.h.b16 %v475
    %v501 = vunpack.c.l.b16 %v476
    %v502 = vunpack.c.h.b16 %v476
    %v503 = vunpack.c.l.b16 %v477
    %v504 = vunpack.c.h.b16 %v477
    %v505 = vunpack.c.l.b16 %v478
    %v506 = vunpack.c.h.b16 %v478
    %v507 = vunpack.c.l.b16 %v479
    %v508 = vunpack.c.h.b16 %v479
    %v509 = vunpack.c.l.b16 %v480
    %v510 = vunpack.c.h.b16 %v480
    %v511 = vunpack.c.l.b16 %v481
    %v512 = vunpack.c.h.b16 %v481
    %v513 = vunpack.c.l.b16 %v482
    %v514 = vunpack.c.h.b16 %v482
    %v515 = vunpack.c.l.b16 %v483
    %v516 = vpack.c.b16 %v495, %v495
    %v517 = vpack.c.b16 %v496, %v496
    %v518 = vpack.c.b16 %v497, %v497
    %v519 = vpack.c.b16 %v498, %v498
    %v520 = vpack.c.b16 %v499, %v499
    %v521 = vpack.c.b16 %v500, %v500
    %v522 = vpack.c.b16 %v501, %v501
    %v523 = vpack.c.b16 %v502, %v502
    %v524 = vpack.c.b16 %v503, %v503
    %v525 = vpack.c.b16 %v504, %v504
    %v526 = vpack.c.b16 %v505, %v505
    %v527 = vpack.c.b16 %v506, %v506
    %v528 = vpack.c.b16 %v507, %v507
    %v529 = vpack.c.b16 %v508, %v508
    %v530 = vpack.c.b16 %v509, %v509
    %v531 = vpack.c.b16 %v510, %v510
    %v532 = vpack.c.b16 %v511, %v511
    %v533 = vpack.c.b16 %v512, %v512
    %v534 = vpack.c.b16 %v513, %v513
    %v535 = vpack.c.b16 %v514, %v514
    %v536 = vpack.c.b16 %v515, %v515
    %vm558 = vcmask 519168
    %559 = vst.msk [vmem:[%s3] sm:$0xf] %vm558, %v516
    %560 = vst.msk [vmem:[%s3 + $0x4] sm:$0xf] %vm558, %v517
    %561 = vst.msk [vmem:[%s3 + $0x8] sm:$0xf] %vm558, %v518
    %562 = vst.msk [vmem:[%s3 + $0xc] sm:$0xf] %vm558, %v519
    %563 = vst.msk [vmem:[%s3 + $0x10] sm:$0xf] %vm558, %v520
    %564 = vst.msk [vmem:[%s3 + $0x14] sm:$0xf] %vm558, %v521
    %565 = vst.msk [vmem:[%s3 + $0x18] sm:$0xf] %vm558, %v522
    %566 = vst.msk [vmem:[%s3 + $0x1c] sm:$0xf] %vm558, %v523
    %567 = vst.msk [vmem:[%s3 + $0x20] sm:$0xf] %vm558, %v524
    %568 = vst.msk [vmem:[%s3 + $0x24] sm:$0xf] %vm558, %v525
    %569 = vst.msk [vmem:[%s3 + $0x28] sm:$0xf] %vm558, %v526
    %570 = vst.msk [vmem:[%s3 + $0x2c] sm:$0xf] %vm558, %v527
    %571 = vst.msk [vmem:[%s3 + $0x30] sm:$0xf] %vm558, %v528
    %572 = vst.msk [vmem:[%s3 + $0x34] sm:$0xf] %vm558, %v529
    %573 = vst.msk [vmem:[%s3 + $0x38] sm:$0xf] %vm558, %v530
    %574 = vst.msk [vmem:[%s3 + $0x3c] sm:$0xf] %vm558, %v531
    %575 = vst.msk [vmem:[%s3 + $0x40] sm:$0xf] %vm558, %v532
    %576 = vst.msk [vmem:[%s3 + $0x44] sm:$0xf] %vm558, %v533
    %577 = vst.msk [vmem:[%s3 + $0x48] sm:$0xf] %vm558, %v534
    %578 = vst.msk [vmem:[%s3 + $0x4c] sm:$0xf] %vm558, %v535
    %vm579 = vcmask 516096
    %580 = vst.msk [vmem:[%s3 + $0x50] sm:$0x1] %vm579, %v536
  $region21: #{conv3x3_im2col.1} parent=0 // pred_fallthru
    _
  // Predicated region
  $region22: #{conv3x3_im2col.1} parent=0 // pred_check
    _
  $region23: #{conv3x3_im2col.1} parent=0 // pred_check_branch
    %582 = sbr.rel (0) target = $region25
  $region24: #{conv3x3_im2col.1} parent=0 // pred_region
    _
  $region25: #{conv3x3_im2col.1} parent=0 // pred_fallthru
    _
  // Predicated region
  $region26: #{conv3x3_im2col.1} parent=0 // pred_check
    _
  $region27: #{conv3x3_im2col.1} parent=0 // pred_check_branch
    %584 = sbr.rel (0) target = $region29
  $region28: #{conv3x3_im2col.1} parent=0 // pred_region
    _
  $region29: #{conv3x3_im2col.1} parent=0 // pred_fallthru
    _

</llo_original>
